<compile_context>
chip_gen: v5e
topology: v5e:2x2
jax: 0.10.0
libtpu: 0.0.40
codegen_flags: <defaults>
</compile_context>

<pallas_src>
import functools

import jax
import jax.numpy as jnp
from jax.experimental import pallas as pl
from jax.experimental.pallas import tpu as pltpu


def _round_up(x, m):
    return (x + m - 1) // m * m


def _length_regulator_kernel(cumsum_ref, out_ref, *, chunk):
    """cumsum_ref: (B_blk, T_pad) int32 inclusive cumsum (token axis edge-padded).
    out_ref:    (B_blk, tile_mel) int32 mel2token tile."""
    B_blk, T_pad = cumsum_ref.shape
    _, tile_mel = out_ref.shape
    n_chunks = T_pad // chunk

    # Per-row total frames = last (edge-padded) cumsum column.
    total = cumsum_ref[:, T_pad - 1:]                                  # (B_blk, 1)

    # Absolute mel positions covered by this output tile (int32 throughout).
    start = pl.program_id(1) * tile_mel
    pos = start + jax.lax.broadcasted_iota(jnp.int32, (1, tile_mel), 1)  # (1, tile)

    # count[b, t] = #{j : cumsum[b, j] <= t}, accumulated over token chunks so
    # only a small (B_blk, chunk, tile) intermediate is ever live.
    count = jnp.zeros((B_blk, tile_mel), jnp.int32)

    def accum(off, cnt):
        cs = cumsum_ref[:, pl.ds(off, chunk)]                          # (B_blk, chunk)
        ended = cs[:, :, None] <= pos[:, None, :]                      # (B_blk, chunk, tile)
        return cnt + jnp.sum(ended.astype(jnp.int32), axis=1)

    if n_chunks <= 16:
        # Static trip count -> fully unrolled (static slice offsets, zero cost).
        for c in range(n_chunks):
            count = accum(c * chunk, count)
    else:
        count = jax.lax.fori_loop(
            0, n_chunks,
            lambda c, cnt: accum(pl.multiple_of(c * chunk, chunk), cnt),
            count)

    # mel2token = 1 + count inside [0, total), 0 elsewhere (single int where).
    out_ref[...] = jnp.where(pos < total, count + 1, 0)


def length_regulator(dur, dur_padding=None, alpha=1.0):
    """Pallas LengthRegulator.forward. Returns mel2token of shape (B, T_mel), int32."""
    assert alpha > 0
    dur = jnp.asarray(dur, jnp.float32)
    B, T_txt = dur.shape

    # --- grid-invariant preprocessing (hoisted out of the kernel) -----------
    dur_r = jnp.round(dur * float(alpha)).astype(jnp.int32)
    if dur_padding is not None:
        dur_r = dur_r * (1 - jnp.asarray(dur_padding, jnp.int32))
    cumsum = jnp.cumsum(dur_r, axis=1)                                  # (B, T_txt) int32

    # TODO(synk): the data-dependent output length forces a blocking
    # device->host sync + per-bucket recompile; unavoidable while T_mel is
    # data-dependent (JAX shapes must be static).
    t_mel = int(jnp.max(cumsum[:, -1]))
    if t_mel <= 0:
        # Degenerate all-zero durations: match the reference's (B, 0) output.
        return jnp.zeros((B, 0), jnp.int32)

    # --- padding / layout ----------------------------------------------------
    # Token-axis chunk for the in-kernel accumulate loop (sublane-aligned).
    chunk = min(32, _round_up(T_txt, 8))
    T_pad = _round_up(T_txt, chunk)
    # Edge-pad so padded columns equal the per-row total -> they never count.
    cumsum = jnp.pad(cumsum, ((0, 0), (0, T_pad - T_txt)), mode="edge")

    # Batch tiled with an 8-row block -> per-tile working set independent of B.
    B_BLK = 8
    B_pad = _round_up(B, B_BLK)
    if B_pad != B:
        cumsum = jnp.pad(cumsum, ((0, B_pad - B), (0, 0)))

    # Coarse bucketing of the output length (fewer recompiles), then pick the
    # mel tile: as wide as possible (lane-dense stores, fewer pipeline steps)
    # while keeping >= 4 total grid steps so both v7x TensorCores get work.
    t_mel_bucket = _round_up(t_mel, 512)
    tile_mel = 2048
    while tile_mel > 128 and \
            ((t_mel_bucket + tile_mel - 1) // tile_mel) * (B_pad // B_BLK) < 4:
        tile_mel //= 2
    tile_mel = min(tile_mel, t_mel_bucket)
    t_mel_pad = _round_up(t_mel_bucket, tile_mel)
    grid = (B_pad // B_BLK, t_mel_pad // tile_mel)

    kernel = functools.partial(_length_regulator_kernel, chunk=chunk)
    out = pl.pallas_call(
        kernel,
        out_shape=jax.ShapeDtypeStruct((B_pad, t_mel_pad), jnp.int32),
        grid=grid,
        in_specs=[pl.BlockSpec((B_BLK, T_pad), lambda b, m: (b, 0))],
        out_specs=pl.BlockSpec((B_BLK, tile_mel), lambda b, m: (b, m)),
        compiler_params=pltpu.CompilerParams(
            dimension_semantics=("parallel", "parallel")),
    )(cumsum)
    return out[:B, :t_mel]


def length_regulator_ref(dur, dur_padding=None, alpha=1.0):
    """Plain-JAX reference mirroring the PyTorch code (for verification)."""
    dur = jnp.round(jnp.asarray(dur, jnp.float32) * alpha).astype(jnp.int32)
    if dur_padding is not None:
        dur = dur * (1 - jnp.asarray(dur_padding, jnp.int32))
    B, T = dur.shape
    token_idx = jnp.arange(1, T + 1)[None, :, None]
    dur_cumsum = jnp.cumsum(dur, axis=1)
    dur_cumsum_prev = jnp.pad(dur_cumsum, ((0, 0), (1, 0)))[:, :-1]
    t_mel = int(jnp.max(jnp.sum(dur, axis=-1)))
    pos = jnp.arange(t_mel)[None, None]
    mask = (pos >= dur_cumsum_prev[:, :, None]) & (pos < dur_cumsum[:, :, None])
    return (token_idx * mask.astype(jnp.int32)).sum(1)


if __name__ == "__main__":
    key = jax.random.PRNGKey(0)
    B, T_txt = 2, 8
    k_dur, k_pad = jax.random.split(key)
    # Durations in [0, 4] (float, as the module would receive predicted durations).
    dur = jax.random.randint(k_dur, (B, T_txt), 0, 5).astype(jnp.float32)
    # Pad out the last two tokens of batch element 1.
    dur_padding = jnp.zeros((B, T_txt), jnp.int32).at[1, -2:].set(1)

    out = length_regulator(dur, dur_padding=dur_padding, alpha=1.0)
    out = jax.block_until_ready(out)
    ref = length_regulator_ref(dur, dur_padding=dur_padding, alpha=1.0)
    assert out.shape == ref.shape, (out.shape, ref.shape)
    assert bool(jnp.all(out == ref)), (out, ref)

    # Second config: alpha rescale, no padding mask (exercises rounding path).
    out2 = length_regulator(dur, dur_padding=None, alpha=1.5)
    out2 = jax.block_until_ready(out2)
    ref2 = length_regulator_ref(dur, dur_padding=None, alpha=1.5)
    assert out2.shape == ref2.shape, (out2.shape, ref2.shape)
    assert bool(jnp.all(out2 == ref2)), (out2, ref2)

    print("KERNEL_OK")
</pallas_src>

<mosaic_0001>
module attributes {stable_mosaic.version = 11 : i64} {
  func.func @_length_regulator_kernel(%arg0: i32, %arg1: i32, %arg2: memref<8x8xi32, #tpu.memory_space<vmem>>, %arg3: memref<8x128xi32, #tpu.memory_space<vmem>>) attributes {dimension_semantics = [#tpu.dimension_semantics<parallel>, #tpu.dimension_semantics<parallel>], iteration_bounds = array<i64: 1, 4>, scalar_prefetch = 0 : i64, scratch_operands = 0 : i64, tpu.core_type = #tpu.core_type<tc>, window_params = [{transform_indices = @transform_0, window_bounds = array<i64: 8, 8>}, {transform_indices = @transform_1, window_bounds = array<i64: 8, 128>}]} {
    %c0 = arith.constant 0 : index
    %c7 = arith.constant 7 : index
    %0 = vector.load %arg2[%c0, %c7] : memref<8x8xi32, #tpu.memory_space<vmem>>, vector<8x1xi32>
    %c128_i32 = arith.constant 128 : i32
    %1 = arith.muli %arg1, %c128_i32 : i32
    %2 = tpu.iota {dimensions = array<i32: 1>} : vector<1x128xi32>
    %3 = vector.broadcast %1 : i32 to vector<1x128xi32>
    %4 = arith.addi %3, %2 : vector<1x128xi32>
    %c0_i32 = arith.constant 0 : i32
    %5 = vector.broadcast %c0_i32 : i32 to vector<8x128xi32>
    %c0_0 = arith.constant 0 : index
    %c0_1 = arith.constant 0 : index
    %6 = vector.load %arg2[%c0_0, %c0_1] : memref<8x8xi32, #tpu.memory_space<vmem>>, vector<8x8xi32>
    %7 = vector.shape_cast %6 : vector<8x8xi32> to vector<8x8x1xi32>
    %8 = vector.shape_cast %4 : vector<1x128xi32> to vector<1x1x128xi32>
    %9 = vector.broadcast %7 : vector<8x8x1xi32> to vector<8x8x128xi32>
    %10 = vector.broadcast %8 : vector<1x1x128xi32> to vector<8x8x128xi32>
    %11 = arith.cmpi sle, %9, %10 : vector<8x8x128xi32>
    %12 = arith.extui %11 : vector<8x8x128xi1> to vector<8x8x128xi32>
    %cst = arith.constant dense<0> : vector<8x128xi32>
    %13 = vector.multi_reduction <add>, %12, %cst [1] : vector<8x8x128xi32> to vector<8x128xi32>
    %14 = arith.addi %5, %13 : vector<8x128xi32>
    %15 = vector.broadcast %4 : vector<1x128xi32> to vector<8x128xi32>
    %16 = vector.broadcast %0 : vector<8x1xi32> to vector<8x128xi32>
    %17 = arith.cmpi slt, %15, %16 : vector<8x128xi32>
    %c1_i32 = arith.constant 1 : i32
    %18 = vector.broadcast %c1_i32 : i32 to vector<8x128xi32>
    %19 = arith.addi %14, %18 : vector<8x128xi32>
    %c0_i32_2 = arith.constant 0 : i32
    %20 = vector.broadcast %c0_i32_2 : i32 to vector<8x128xi32>
    %21 = arith.select %17, %19, %20 : vector<8x128xi1>, vector<8x128xi32>
    %c0_3 = arith.constant 0 : index
    %c0_4 = arith.constant 0 : index
    %22 = vector.load %arg3[%c0_3, %c0_4] : memref<8x128xi32, #tpu.memory_space<vmem>>, vector<8x128xi32>
    tpu.vector_store %arg3[%c0_3, %c0_4], %21 {strides = array<i32>} : memref<8x128xi32, #tpu.memory_space<vmem>>, vector<8x128xi32>,
    return
  }
  func.func @transform_0(%arg0: i32, %arg1: i32) -> (i32, i32) {
    %c0_i32 = arith.constant 0 : i32
    %c0_i32_0 = arith.constant 0 : i32
    return %arg0, %c0_i32 : i32, i32
  }
  func.func @transform_1(%arg0: i32, %arg1: i32) -> (i32, i32) {
    %c0_i32 = arith.constant 0 : i32
    return %arg0, %arg1 : i32, i32
  }
}

</mosaic_0001>

<llo_original>
// kernel: tpu_custom_call.1
$region0: #{tpu_custom_call.1}
  #allocation0 [shape = 'u32[]', space=smem, size = 0x4, offset = 0x4, fixed_abs, tag = 'smem constant byte address 0x4 - core index']
  #allocation1 [shape = 'u32[72,128]{1,0:T(1,128)}', space=vmem, size = 0x9000, scoped, tag = 'internal scratch']
  %s0 = inlined_call_operand.hbm [shape: s32[8,8], index: 0, kind: input, shape index: {}]
  %s1 = inlined_call_operand.hbm [shape: s32[8,512], index: 1, kind: output, shape index: {}]
  %s2 = sld [smem:[#allocation0]]
  $region41: #{tpu_custom_call.1} parent=0
    _
  %s4 = ssub.s32 1, %s2
  %s5 = scalar_select 0, %s4, %s2
  $region1: #{tpu_custom_call.1} parent=0
    #allocation2 [shape = 'u8[4096]{0}', space=vmem, size = 0x1000, scoped, tag = 'input window, operand 0, single buffered']
    #allocation3 [shape = 's32[2]{0}', space=sflag, size = 0x8, scoped, tag = 'scoped memory for tpu_custom_call.1']
    #allocation4 [shape = 's32[2]{0}', space=sflag, size = 0x8, scoped, tag = 'scoped memory for tpu_custom_call.1']
    #allocation5 [shape = 'u8[8192]{0}', space=vmem, size = 0x2000, scoped, tag = 'output window, operand 0']
    %6 = vsyncpa [#allocation3], 0
    %7 = vsyncpa [#allocation4], 0
    %s8 = scalar_lea.sflag [#allocation4], 1
    %9 = vsyncpa %s8, 0
    loop: start=0, step=1, limit=6
    $region2: #{tpu_custom_call.1} parent=1 // loop_pre_header
      _
    $region3: #{tpu_custom_call.1} parent=1 // loop_header
      %s11 = sphi 0, %s15
      %p12 = scmp.ge.s32.totalorder %s11, 6
      %s18 = sphi 0, %s30
      %s19 = sphi 0, %s26
      %s20 = sphi 0, %s18
      %s21 = sphi 0, %s19
      %s22 = sphi 0, %s20
      %s23 = sphi 0, %s21
      %s33 = sphi 0, %s35
      %s36 = sphi 0, %s33
      %s37 = sphi 0, %s36
      %s53 = sphi 0, %s37
      %s61 = sphi 0, %s63
      %s64 = sphi 0, %s61
      %s65 = sphi 0, %s64
      %s81 = sphi 0, %s65
    $region4: #{tpu_custom_call.1} parent=1 // loop_header_branch
      %14 = sbr.rel (%p12) target = $region8
    $region5: #{tpu_custom_call.1} parent=1 // loop_body
      %s16 = ssub.s32 %s11, 1
      %s17 = ssub.s32 %s11, 2
      %s24 = sadd.s32 1, %s19
      %p25 = scmp.ge.s32.totalorder %s24, 4
      %s26 = scalar_select %p25, 0, %s24
      %s27 = sadd.s32 1, %s18
      %s28 = scalar_select %p25, %s27, %s18
      %p29 = scmp.ge.s32.totalorder %s28, 1
      %s30 = scalar_select %p29, 0, %s28
      %s31 = ssub.s32 %s18, %s30
      %p32 = scmp.eq.s32.totalorder %s31, 0
      %s34 = sadd.s32 %s33, 1
      %s35 = scalar_select %p32, %s33, %s34
      %p38 = pneg %p32
      %p39 = scmp.eq.s32.totalorder %s11, 3
      %p40 = por %p38, %p39
      %p41 = scmp.ne.s32.totalorder %s33, %s36
      %p42 = scmp.eq.s32.totalorder %s11, 0
      %p43 = por %p41, %p42
      %p44 = scmp.ne.s32.totalorder %s33, %s36
      %p45 = scmp.eq.s32.totalorder %s16, 3
      %p46 = por %p44, %p45
      %p47 = scmp.ne.s32.totalorder %s36, %s37
      %p48 = scmp.eq.s32.totalorder %s16, 0
      %p49 = por %p47, %p48
      %p50 = scmp.ne.s32.totalorder %s36, %s37
      %p51 = scmp.eq.s32.totalorder %s17, 3
      %p52 = por %p50, %p51
      %p54 = scmp.ne.s32.totalorder %s37, %s53
      %p55 = scmp.eq.s32.totalorder %s17, 0
      %p56 = por %p54, %p55
      %s57 = ssub.s32 %s18, %s30
      %s58 = ssub.s32 %s19, %s26
      %s59 = sor.u32 %s57, %s58
      %p60 = scmp.eq.s32.totalorder %s59, 0
      %s62 = sadd.s32 %s61, 1
      %s63 = scalar_select %p60, %s61, %s62
      %p66 = pneg %p60
      %p67 = scmp.eq.s32.totalorder %s11, 3
      %p68 = por %p66, %p67
      %p69 = scmp.ne.s32.totalorder %s61, %s64
      %p70 = scmp.eq.s32.totalorder %s11, 0
      %p71 = por %p69, %p70
      %p72 = scmp.ne.s32.totalorder %s61, %s64
      %p73 = scmp.eq.s32.totalorder %s16, 3
      %p74 = por %p72, %p73
      %p75 = scmp.ne.s32.totalorder %s64, %s65
      %p76 = scmp.eq.s32.totalorder %s16, 0
      %p77 = por %p75, %p76
      %p78 = scmp.ne.s32.totalorder %s64, %s65
      %p79 = scmp.eq.s32.totalorder %s17, 3
      %p80 = por %p78, %p79
      %p82 = scmp.ne.s32.totalorder %s65, %s81
      %p83 = scmp.eq.s32.totalorder %s17, 0
      %p84 = por %p82, %p83
      %p85 = scmp.le.s32.totalorder 1, %s11
      %p86 = scmp.lt.s32.totalorder %s11, 5
      %p87 = pnand %p85, %p86
      %p88 = pneg %p87
      // Predicated region
      $region9: #{tpu_custom_call.1} parent=5 // pred_check
        _
      $region10: #{tpu_custom_call.1} parent=5 // pred_check_branch
        %90 = sbr.rel (%p87) target = $region12
      $region11: #{tpu_custom_call.1} parent=5 // pred_region
        %s91 = ssub.s32 %s11, 1
        // Predicated region
        $region13: #{tpu_custom_call.1} parent=11 // pred_check
          %p92 = pneg %p49
        $region14: #{tpu_custom_call.1} parent=11 // pred_check_branch
          %94 = sbr.rel (%p92) target = $region16
        $region15: #{tpu_custom_call.1} parent=11 // pred_region
          %96 = vsyncadd [#allocation3], 0
          %s97 = smul.addr %s20, 8
          %s98 = scalar_lea.hbm %s0, %s97
          %s100 = sshll.u32 %s98, 4
          %s101 = int_to_ptr.hbm [resolvable:$true] %s100
          %s102 = sshll.u32 [#allocation2], 4
          %s103 = int_to_ptr.vmem [resolvable:$true] %s102
          %105 = dma.hbm_to_vmem [thread:$0]  %s101, 128, %s103, [#allocation3]
        $region16: #{tpu_custom_call.1} parent=11 // pred_fallthru
          _
      $region12: #{tpu_custom_call.1} parent=5 // pred_fallthru
        _
      %p106 = scmp.lt.s32.totalorder %s11, 4
      // Predicated region
      $region17: #{tpu_custom_call.1} parent=5 // pred_check
        %p107 = pneg %p106
      $region18: #{tpu_custom_call.1} parent=5 // pred_check_branch
        %109 = sbr.rel (%p107) target = $region20
      $region19: #{tpu_custom_call.1} parent=5 // pred_region
        _
      $region20: #{tpu_custom_call.1} parent=5 // pred_fallthru
        _
      %p110 = scmp.le.s32.totalorder 1, %s11
      %p111 = scmp.lt.s32.totalorder %s11, 5
      %p112 = pnand %p110, %p111
      %p113 = pneg %p112
      // Predicated region
      $region21: #{tpu_custom_call.1} parent=5 // pred_check
        _
      $region22: #{tpu_custom_call.1} parent=5 // pred_check_branch
        %115 = sbr.rel (%p112) target = $region24
      $region23: #{tpu_custom_call.1} parent=5 // pred_region
        %s116 = ssub.s32 %s11, 1
        // Predicated region
        $region25: #{tpu_custom_call.1} parent=23 // pred_check
          %p117 = pneg %p49
        $region26: #{tpu_custom_call.1} parent=23 // pred_check_branch
          %119 = sbr.rel (%p117) target = $region28
        $region27: #{tpu_custom_call.1} parent=23 // pred_region
          %121 = dma.done [#allocation3], 128
        $region28: #{tpu_custom_call.1} parent=23 // pred_fallthru
          _
        %p122 = pneg %p49
        %p123 = pneg %p46
        %p124 = pneg %p77
        %p125 = pneg %p74
        %s126 = sand.u32 %s64, 1
        %s127 = scalar_lea.sflag [#allocation4], %s126
        %s128 = sand.u32 %s64, 1
        %s129 = smul.addr %s128, 8
        %s130 = scalar_lea.vmem [#allocation5], %s129
        %v131 = vld [vmem:[#allocation2] sm:$0xff]
        %s132 = smul.u32 %s21, 128
        %v133 = vlaneseq
        %v134 = vand.u32 %v133, 127
        %v135 = vstv %s132
        %v136 = vadd.s32 %v135, %v134
        %v137 = vperm.slane %v131, 0
        %v138 = vlaneseq
        %v139 = vshrl.u32 %v138, 7
        %141 = vset.pattern.permute.xlu0 %v139
        %142 = vperm.xlu0 %141, %v137
        %v143 = vpop.permute.xlu0 %142
        %v144 = vperm.slane %v131, 1
        %v145 = vlaneseq
        %v146 = vshrl.u32 %v145, 7
        %148 = vset.pattern.permute.xlu0 %v146
        %149 = vperm.xlu0 %148, %v144
        %v150 = vpop.permute.xlu0 %149
        %v151 = vperm.slane %v131, 2
        %v152 = vlaneseq
        %v153 = vshrl.u32 %v152, 7
        %155 = vset.pattern.permute.xlu0 %v153
        %156 = vperm.xlu0 %155, %v151
        %v157 = vpop.permute.xlu0 %156
        %v158 = vperm.slane %v131, 3
        %v159 = vlaneseq
        %v160 = vshrl.u32 %v159, 7
        %162 = vset.pattern.permute.xlu0 %v160
        %163 = vperm.xlu0 %162, %v158
        %v164 = vpop.permute.xlu0 %163
        %v165 = vperm.slane %v131, 4
        %v166 = vlaneseq
        %v167 = vshrl.u32 %v166, 7
        %169 = vset.pattern.permute.xlu0 %v167
        %170 = vperm.xlu0 %169, %v165
        %v171 = vpop.permute.xlu0 %170
        %v172 = vperm.slane %v131, 5
        %v173 = vlaneseq
        %v174 = vshrl.u32 %v173, 7
        %176 = vset.pattern.permute.xlu0 %v174
        %177 = vperm.xlu0 %176, %v172
        %v178 = vpop.permute.xlu0 %177
        %v179 = vperm.slane %v131, 6
        %v180 = vlaneseq
        %v181 = vshrl.u32 %v180, 7
        %183 = vset.pattern.permute.xlu0 %v181
        %184 = vperm.xlu0 %183, %v179
        %v185 = vpop.permute.xlu0 %184
        %v186 = vperm.slane %v131, 7
        %v187 = vlaneseq
        %v188 = vshrl.u32 %v187, 7
        %190 = vset.pattern.permute.xlu0 %v188
        %191 = vperm.xlu0 %190, %v186
        %v192 = vpop.permute.xlu0 %191
        %vm193 = vcmp.le.s32.totalorder %v143, %v136
        %vm194 = vcmp.le.s32.totalorder %v150, %v136
        %vm195 = vcmp.le.s32.totalorder %v157, %v136
        %vm196 = vcmp.le.s32.totalorder %v164, %v136
        %vm197 = vcmp.le.s32.totalorder %v171, %v136
        %vm198 = vcmp.le.s32.totalorder %v178, %v136
        %vm199 = vcmp.le.s32.totalorder %v185, %v136
        %vm200 = vcmp.le.s32.totalorder %v192, %v136
        %v201 = vsel %vm193, 1, 0
        %v202 = vsel %vm194, 1, 0
        %v203 = vsel %vm195, 1, 0
        %v204 = vsel %vm196, 1, 0
        %v205 = vsel %vm197, 1, 0
        %v206 = vsel %vm198, 1, 0
        %v207 = vsel %vm199, 1, 0
        %v208 = vsel %vm200, 1, 0
        %v209 = vrot.slane %v201, 4
        %v210 = vadd.s32 %v201, %v209
        %v211 = vrot.slane %v210, 2
        %v212 = vadd.s32 %v210, %v211
        %v213 = vrot.slane %v212, 1
        %v214 = vadd.s32 %v212, %v213
        %v215 = vrot.slane %v202, 4
        %v216 = vadd.s32 %v202, %v215
        %v217 = vrot.slane %v216, 2
        %v218 = vadd.s32 %v216, %v217
        %v219 = vrot.slane %v218, 1
        %v220 = vadd.s32 %v218, %v219
        %v221 = vrot.slane %v203, 4
        %v222 = vadd.s32 %v203, %v221
        %v223 = vrot.slane %v222, 2
        %v224 = vadd.s32 %v222, %v223
        %v225 = vrot.slane %v224, 1
        %v226 = vadd.s32 %v224, %v225
        %v227 = vrot.slane %v204, 4
        %v228 = vadd.s32 %v204, %v227
        %v229 = vrot.slane %v228, 2
        %v230 = vadd.s32 %v228, %v229
        %v231 = vrot.slane %v230, 1
        %v232 = vadd.s32 %v230, %v231
        %v233 = vrot.slane %v205, 4
        %v234 = vadd.s32 %v205, %v233
        %v235 = vrot.slane %v234, 2
        %v236 = vadd.s32 %v234, %v235
        %v237 = vrot.slane %v236, 1
        %v238 = vadd.s32 %v236, %v237
        %v239 = vrot.slane %v206, 4
        %v240 = vadd.s32 %v206, %v239
        %v241 = vrot.slane %v240, 2
        %v242 = vadd.s32 %v240, %v241
        %v243 = vrot.slane %v242, 1
        %v244 = vadd.s32 %v242, %v243
        %v245 = vrot.slane %v207, 4
        %v246 = vadd.s32 %v207, %v245
        %v247 = vrot.slane %v246, 2
        %v248 = vadd.s32 %v246, %v247
        %v249 = vrot.slane %v248, 1
        %v250 = vadd.s32 %v248, %v249
        %v251 = vrot.slane %v208, 4
        %v252 = vadd.s32 %v208, %v251
        %v253 = vrot.slane %v252, 2
        %v254 = vadd.s32 %v252, %v253
        %v255 = vrot.slane %v254, 1
        %v256 = vadd.s32 %v254, %v255
        %257 = vset.pattern.permute.xlu0 7
        %258 = vperm.xlu0 %257, %v131
        %v259 = vpop.permute.xlu0 %258
        %vm260 = vcmp.lt.s32.totalorder %v136, %v259
        %v261 = vadd.s32 %v214, 1
        %v262 = vadd.s32 %v220, 1
        %v263 = vadd.s32 %v226, 1
        %v264 = vadd.s32 %v232, 1
        %v265 = vadd.s32 %v238, 1
        %v266 = vadd.s32 %v244, 1
        %v267 = vadd.s32 %v250, 1
        %v268 = vadd.s32 %v256, 1
        %vm269 = vcmask 1041409
        %v270 = vsel %vm269, %v262, %v261
        %vm271 = vcmask 1042434
        %v272 = vsel %vm271, %v263, %v270
        %vm273 = vcmask 1043459
        %v274 = vsel %vm273, %v264, %v272
        %vm275 = vcmask 1044484
        %v276 = vsel %vm275, %v265, %v274
        %vm277 = vcmask 1045509
        %v278 = vsel %vm277, %v266, %v276
        %vm279 = vcmask 1046534
        %v280 = vsel %vm279, %v267, %v278
        %vm281 = vcmask 1047559
        %v282 = vsel %vm281, %v268, %v280
        %v283 = vsel %vm260, %v282, 0
        %284 = vst [vmem:[%s130] sm:$0xff] %v283
        %s285 = sand.u32 %s64, 1
        %s286 = scalar_lea.sflag [#allocation4], %s285
        %s287 = sand.u32 %s64, 1
        %s288 = smul.addr %s287, 8
        %s289 = scalar_lea.vmem [#allocation5], %s288
        // Predicated region
        $region29: #{tpu_custom_call.1} parent=23 // pred_check
          %p290 = pneg %p74
        $region30: #{tpu_custom_call.1} parent=23 // pred_check_branch
          %292 = sbr.rel (%p290) target = $region32
        $region31: #{tpu_custom_call.1} parent=23 // pred_region
          %294 = vsyncadd %s286, 0
          %s295 = smul.addr %s20, 4
          %s296 = sadd.s32 %s21, %s295
          %s297 = smul.addr %s296, 8
          %s298 = scalar_lea.hbm %s1, %s297
          %s300 = sshll.u32 %s289, 4
          %s301 = int_to_ptr.vmem [resolvable:$true] %s300
          %s302 = sshll.u32 %s298, 4
          %s303 = int_to_ptr.hbm [resolvable:$true] %s302
          %305 = dma.vmem_to_hbm [thread:$0]  %s301, 128, %s303, %s286
        $region32: #{tpu_custom_call.1} parent=23 // pred_fallthru
          _
      $region24: #{tpu_custom_call.1} parent=5 // pred_fallthru
        _
      %p306 = scmp.le.s32.totalorder 2, %s11
      // Predicated region
      $region33: #{tpu_custom_call.1} parent=5 // pred_check
        %p307 = pneg %p306
      $region34: #{tpu_custom_call.1} parent=5 // pred_check_branch
        %309 = sbr.rel (%p307) target = $region36
      $region35: #{tpu_custom_call.1} parent=5 // pred_region
        %s310 = ssub.s32 %s11, 2
        // Predicated region
        $region37: #{tpu_custom_call.1} parent=35 // pred_check
          %p311 = pneg %p80
        $region38: #{tpu_custom_call.1} parent=35 // pred_check_branch
          %313 = sbr.rel (%p311) target = $region40
        $region39: #{tpu_custom_call.1} parent=35 // pred_region
          %s314 = sand.u32 %s65, 1
          %s315 = scalar_lea.sflag [#allocation4], %s314
          %s316 = sand.u32 %s65, 1
          %s317 = smul.addr %s316, 8
          %s318 = scalar_lea.vmem [#allocation5], %s317
          %320 = dma.done %s315, 128
        $region40: #{tpu_custom_call.1} parent=35 // pred_fallthru
          _
      $region36: #{tpu_custom_call.1} parent=5 // pred_fallthru
        _
    $region6: #{tpu_custom_call.1} parent=1 // loop_footer
      %s15 = sadd.s32 1, %s11
    $region7: #{tpu_custom_call.1} parent=1 // loop_footer_branch
      %10 = sbr.rel target = $region3
    $region8: #{tpu_custom_call.1} parent=1 // loop_exit
      _
    %321 = vsyncpa [#allocation3], 1
    %s322 = scalar_lea.sflag [#allocation3], 1
    %323 = vsyncpa %s322, 1
    %324 = vsyncpa [#allocation4], 1
    %s325 = scalar_lea.sflag [#allocation4], 1
    %326 = vsyncpa %s325, 1

</llo_original>
